<compile_context>
chip_gen: v7x
topology: tpu7x:2x2x1
jax: 0.10.0
libtpu: 0.0.40
codegen_flags: <defaults>
</compile_context>

<pallas_src>
import jax
import jax.numpy as jnp
from jax import lax
from jax.experimental import pallas as pl
from jax.experimental.pallas import tpu as pltpu


def word2vec_kernel(idx_ref,   # (B_pad,) int32   scalar-prefetch token ids (SMEM)
                    emb_ref,   # (V, E)  f32      embedding table, HBM (pl.ANY)
                    w_ref,     # (TV, E) bf16     weight tile (native layout), VMEM
                    b_ref,     # (1, TV) f32      bias tile, VMEM
                    out_ref,   # (n_tiles, B_pad, TV) f32, VMEM-resident output
                    x_ref,     # (B_pad, E) f32   gathered embedding rows (scratch)
                    m_ref,     # (B_pad, 1) f32   running max (scratch)
                    l_ref,     # (B_pad, 1) f32   running sum of exp (scratch)
                    sem):      # DMA semaphore
    j = pl.program_id(0)
    b_pad = x_ref.shape[0]

    @pl.when(j == 0)
    def _init():
        m_ref[...] = jnp.full_like(m_ref, -jnp.inf)
        l_ref[...] = jnp.zeros_like(l_ref)
        # DMA-gather the B_pad embedding rows selected by the prefetched ids
        # (one small (1, E) copy per row; happens once for the whole grid).
        for i in range(b_pad):
            tok = idx_ref[i]
            cp = pltpu.make_async_copy(emb_ref.at[pl.ds(tok, 1)],
                                       x_ref.at[pl.ds(i, 1)],
                                       sem)
            cp.start()
            cp.wait()

    # (B_pad, E) @ (TV, E)^T on the MXU: bf16 inputs, f32 accumulation.
    x = x_ref[...].astype(jnp.bfloat16)
    logits = lax.dot_general(
        x, w_ref[...],
        dimension_numbers=(((1,), (1,)), ((), ())),      # contract on E
        preferred_element_type=jnp.float32)              # (B_pad, TV)
    logits = logits + b_ref[...]

    # Stash raw logits for this vocab tile in the resident output block.
    out_ref[j] = logits

    # Online softmax accumulators across vocab tiles.
    m_prev = m_ref[...]
    m_new = jnp.maximum(m_prev, jnp.max(logits, axis=-1, keepdims=True))
    l_ref[...] = (l_ref[...] * jnp.exp(m_prev - m_new)
                  + jnp.sum(jnp.exp(logits - m_new), axis=-1, keepdims=True))
    m_ref[...] = m_new

    @pl.when(j == pl.num_programs(0) - 1)
    def _finalize():
        m = m_ref[...]                                    # (B_pad, 1)
        inv_l = pl.reciprocal(l_ref[...], approx=True)    # (B_pad, 1), EUP
        p = jnp.exp(out_ref[...] - m[None, :, :])         # (n_tiles, B_pad, TV)
        out_ref[...] = p * inv_l[None, :, :]


def word2vec_forward(token_idx, embedding, linear_w, linear_b, *, tv=256):
    """Batched Word2Vec forward.

    token_idx : (B,) int32 token ids (B=1 matches the PyTorch module exactly)
    embedding : (V, E) f32  nn.Embedding weight
    linear_w  : (V, E) f32  nn.Linear weight (native PyTorch layout, no transpose)
    linear_b  : (V,)   f32  nn.Linear bias
    returns   : (B, V) f32; row i == softmax(linear_w @ embedding[token_idx[i]] + b)
    """
    assert tv % 128 == 0, "vocab tile must be lane-aligned (multiple of 128)"
    V, E = embedding.shape
    token_idx = jnp.asarray(token_idx, jnp.int32).reshape(-1)
    B = token_idx.shape[0]

    bsz_pad = ((max(B, 1) + 7) // 8) * 8          # sublane multiple of 8
    v_pad = ((V + tv - 1) // tv) * tv             # multiple of TV (and of 128)
    n_tiles = v_pad // tv

    idx_p = jnp.zeros((bsz_pad,), jnp.int32).at[:B].set(token_idx)
    w_p = jnp.zeros((v_pad, E), jnp.bfloat16).at[:V, :].set(
        linear_w.astype(jnp.bfloat16))
    # padded vocab columns get -1e30 bias -> exp underflows to exactly 0
    bias_p = jnp.full((1, v_pad), -1e30, jnp.float32).at[0, :V].set(
        linear_b.astype(jnp.float32))

    out3 = pl.pallas_call(
        word2vec_kernel,
        out_shape=jax.ShapeDtypeStruct((n_tiles, bsz_pad, tv), jnp.float32),
        grid_spec=pltpu.PrefetchScalarGridSpec(
            num_scalar_prefetch=1,
            grid=(n_tiles,),
            in_specs=[
                pl.BlockSpec(memory_space=pl.ANY),                  # embedding (HBM)
                pl.BlockSpec((tv, E), lambda j, idx: (j, 0)),       # weight tile
                pl.BlockSpec((1, tv), lambda j, idx: (0, j)),       # bias tile
            ],
            # Same block index every step -> output stays resident in VMEM
            # across the vocab axis and is written back once at the end.
            out_specs=pl.BlockSpec((n_tiles, bsz_pad, tv),
                                   lambda j, idx: (0, 0, 0)),
            scratch_shapes=[
                pltpu.VMEM((bsz_pad, E), jnp.float32),   # gathered embedding rows
                pltpu.VMEM((bsz_pad, 1), jnp.float32),   # running max
                pltpu.VMEM((bsz_pad, 1), jnp.float32),   # running sum of exp
                pltpu.SemaphoreType.DMA(()),
            ]),
        compiler_params=pltpu.CompilerParams(
            # vocab axis carries the online-softmax accumulators -> arbitrary
            dimension_semantics=("arbitrary",),
            vmem_limit_bytes=32 * 1024 * 1024),
    )(idx_p, embedding, w_p, bias_p)

    # (n_tiles, B_pad, TV) -> (B_pad, V_pad) -> strip padding.
    out = jnp.transpose(out3, (1, 0, 2)).reshape(bsz_pad, v_pad)
    return out[:B, :V]


if __name__ == "__main__":
    vocab_size = 1000
    embedding_size = 64
    n_tokens = 4

    key = jax.random.PRNGKey(0)
    k_emb, k_w, k_b, k_tok = jax.random.split(key, 4)

    embedding = jax.random.normal(k_emb, (vocab_size, embedding_size), jnp.float32)
    linear_w = jax.random.normal(k_w, (vocab_size, embedding_size), jnp.float32) * 0.1
    linear_b = jax.random.normal(k_b, (vocab_size,), jnp.float32) * 0.1
    token_idx = jax.random.randint(k_tok, (n_tokens,), 0, vocab_size, jnp.int32)

    out = word2vec_forward(token_idx, embedding, linear_w, linear_b, tv=256)
    out = jax.block_until_ready(out)
    assert out.shape == (n_tokens, vocab_size)

    # Every output row must equal the PyTorch module's single-token forward.
    w_bf16 = linear_w.astype(jnp.bfloat16)
    for i in range(n_tokens):
        e = embedding[token_idx[i]]
        # exact-f32 module reference (loose check: kernel uses bf16 weights)
        ref_f32 = jax.nn.softmax(linear_w @ e + linear_b, axis=0)
        # precision-matched (bf16 matmul, f32 accumulate) reference (tight check)
        logits_bf = jnp.dot(e.astype(jnp.bfloat16)[None, :], w_bf16.T,
                            preferred_element_type=jnp.float32)[0] + linear_b
        ref_bf = jax.nn.softmax(logits_bf, axis=0)

        assert jnp.allclose(out[i], ref_bf, atol=1e-5, rtol=2e-2), \
            f"row {i}: mismatch vs bf16-matched reference"
        assert jnp.allclose(out[i], ref_f32, atol=5e-4, rtol=5e-2), \
            f"row {i}: mismatch vs f32 module reference"

    print("KERNEL_OK")
</pallas_src>

<mosaic_0001>
module attributes {stable_mosaic.version = 11 : i64} {
  func.func @word2vec_kernel(%arg0: i32, %arg1: memref<8xi32, #tpu.memory_space<smem>>, %arg2: memref<1000x64xf32, #tpu.memory_space<any>>, %arg3: memref<256x64xbf16, #tpu.memory_space<vmem>>, %arg4: memref<1x256xf32, #tpu.memory_space<vmem>>, %arg5: memref<4x8x256xf32, #tpu.memory_space<vmem>>, %arg6: memref<8x64xf32, #tpu.memory_space<vmem>>, %arg7: memref<8x1xf32, #tpu.memory_space<vmem>>, %arg8: memref<8x1xf32, #tpu.memory_space<vmem>>, %arg9: memref<!tpu.dma_semaphore, #tpu.memory_space<semaphore_mem>>) attributes {dimension_semantics = [#tpu.dimension_semantics<arbitrary>], iteration_bounds = array<i64: 4>, scalar_prefetch = 1 : i64, scratch_operands = 4 : i64, tpu.core_type = #tpu.core_type<tc>, window_params = [{}, {transform_indices = @transform_1, window_bounds = array<i64: 256, 64>}, {transform_indices = @transform_2, window_bounds = array<i64: 1, 256>}, {pipeline_mode = #tpu.pipeline_mode<synchronous>, transform_indices = @transform_3, window_bounds = array<i64: 4, 8, 256>}]} {
    %c0_i32 = arith.constant 0 : i32
    %0 = arith.cmpi eq, %arg0, %c0_i32 : i32
    %1 = arith.extui %0 : i1 to i32
    %c0_i32_0 = arith.constant 0 : i32
    %2 = arith.cmpi ne, %1, %c0_i32_0 : i32
    scf.if %2 {
      %cst_19 = arith.constant 0xFF800000 : f32
      %33 = vector.broadcast %cst_19 : f32 to vector<8x1xf32>
      %c0_20 = arith.constant 0 : index
      %c0_21 = arith.constant 0 : index
      %34 = vector.load %arg7[%c0_20, %c0_21] : memref<8x1xf32, #tpu.memory_space<vmem>>, vector<8x1xf32>
      tpu.vector_store %arg7[%c0_20, %c0_21], %33 {strides = array<i32>} : memref<8x1xf32, #tpu.memory_space<vmem>>, vector<8x1xf32>,
      %cst_22 = arith.constant 0.000000e+00 : f32
      %35 = vector.broadcast %cst_22 : f32 to vector<8x1xf32>
      %c0_23 = arith.constant 0 : index
      %c0_24 = arith.constant 0 : index
      %36 = vector.load %arg8[%c0_23, %c0_24] : memref<8x1xf32, #tpu.memory_space<vmem>>, vector<8x1xf32>
      tpu.vector_store %arg8[%c0_23, %c0_24], %35 {strides = array<i32>} : memref<8x1xf32, #tpu.memory_space<vmem>>, vector<8x1xf32>,
      %c0_25 = arith.constant 0 : index
      %37 = memref.load %arg1[%c0_25] : memref<8xi32, #tpu.memory_space<smem>>
      %c0_i32_26 = arith.constant 0 : i32
      %38 = tpu.memref_slice %arg2[%37, %c0_i32_26] : memref<1000x64xf32, #tpu.memory_space<any>> -> memref<1x64xf32, #tpu.memory_space<any>>
      %c0_i32_27 = arith.constant 0 : i32
      %c0_i32_28 = arith.constant 0 : i32
      %39 = tpu.memref_slice %arg6[%c0_i32_27, %c0_i32_28] : memref<8x64xf32, #tpu.memory_space<vmem>> -> memref<1x64xf32, #tpu.memory_space<vmem>>
      tpu.enqueue_dma source(%38 : memref<1x64xf32, #tpu.memory_space<any>>) target(%39 : memref<1x64xf32, #tpu.memory_space<vmem>>) target_semaphore(%arg9 : memref<!tpu.dma_semaphore, #tpu.memory_space<semaphore_mem>>)
      %c0_i32_29 = arith.constant 0 : i32
      %40 = tpu.memref_slice %arg2[%37, %c0_i32_29] : memref<1000x64xf32, #tpu.memory_space<any>> -> memref<1x64xf32, #tpu.memory_space<any>>
      %c0_i32_30 = arith.constant 0 : i32
      %c0_i32_31 = arith.constant 0 : i32
      %41 = tpu.memref_slice %arg6[%c0_i32_30, %c0_i32_31] : memref<8x64xf32, #tpu.memory_space<vmem>> -> memref<1x64xf32, #tpu.memory_space<vmem>>
      tpu.wait_dma2 semaphore(%arg9 : memref<!tpu.dma_semaphore, #tpu.memory_space<semaphore_mem>>) src(%40 : memref<1x64xf32, #tpu.memory_space<any>>) dst(%41 : memref<1x64xf32, #tpu.memory_space<vmem>>)
      %c1 = arith.constant 1 : index
      %42 = memref.load %arg1[%c1] : memref<8xi32, #tpu.memory_space<smem>>
      %c0_i32_32 = arith.constant 0 : i32
      %43 = tpu.memref_slice %arg2[%42, %c0_i32_32] : memref<1000x64xf32, #tpu.memory_space<any>> -> memref<1x64xf32, #tpu.memory_space<any>>
      %c1_i32 = arith.constant 1 : i32
      %c0_i32_33 = arith.constant 0 : i32
      %44 = tpu.memref_slice %arg6[%c1_i32, %c0_i32_33] : memref<8x64xf32, #tpu.memory_space<vmem>> -> memref<1x64xf32, #tpu.memory_space<vmem>>
      tpu.enqueue_dma source(%43 : memref<1x64xf32, #tpu.memory_space<any>>) target(%44 : memref<1x64xf32, #tpu.memory_space<vmem>>) target_semaphore(%arg9 : memref<!tpu.dma_semaphore, #tpu.memory_space<semaphore_mem>>)
      %c0_i32_34 = arith.constant 0 : i32
      %45 = tpu.memref_slice %arg2[%42, %c0_i32_34] : memref<1000x64xf32, #tpu.memory_space<any>> -> memref<1x64xf32, #tpu.memory_space<any>>
      %c1_i32_35 = arith.constant 1 : i32
      %c0_i32_36 = arith.constant 0 : i32
      %46 = tpu.memref_slice %arg6[%c1_i32_35, %c0_i32_36] : memref<8x64xf32, #tpu.memory_space<vmem>> -> memref<1x64xf32, #tpu.memory_space<vmem>>
      tpu.wait_dma2 semaphore(%arg9 : memref<!tpu.dma_semaphore, #tpu.memory_space<semaphore_mem>>) src(%45 : memref<1x64xf32, #tpu.memory_space<any>>) dst(%46 : memref<1x64xf32, #tpu.memory_space<vmem>>)
      %c2 = arith.constant 2 : index
      %47 = memref.load %arg1[%c2] : memref<8xi32, #tpu.memory_space<smem>>
      %c0_i32_37 = arith.constant 0 : i32
      %48 = tpu.memref_slice %arg2[%47, %c0_i32_37] : memref<1000x64xf32, #tpu.memory_space<any>> -> memref<1x64xf32, #tpu.memory_space<any>>
      %c2_i32 = arith.constant 2 : i32
      %c0_i32_38 = arith.constant 0 : i32
      %49 = tpu.memref_slice %arg6[%c2_i32, %c0_i32_38] : memref<8x64xf32, #tpu.memory_space<vmem>> -> memref<1x64xf32, #tpu.memory_space<vmem>>
      tpu.enqueue_dma source(%48 : memref<1x64xf32, #tpu.memory_space<any>>) target(%49 : memref<1x64xf32, #tpu.memory_space<vmem>>) target_semaphore(%arg9 : memref<!tpu.dma_semaphore, #tpu.memory_space<semaphore_mem>>)
      %c0_i32_39 = arith.constant 0 : i32
      %50 = tpu.memref_slice %arg2[%47, %c0_i32_39] : memref<1000x64xf32, #tpu.memory_space<any>> -> memref<1x64xf32, #tpu.memory_space<any>>
      %c2_i32_40 = arith.constant 2 : i32
      %c0_i32_41 = arith.constant 0 : i32
      %51 = tpu.memref_slice %arg6[%c2_i32_40, %c0_i32_41] : memref<8x64xf32, #tpu.memory_space<vmem>> -> memref<1x64xf32, #tpu.memory_space<vmem>>
      tpu.wait_dma2 semaphore(%arg9 : memref<!tpu.dma_semaphore, #tpu.memory_space<semaphore_mem>>) src(%50 : memref<1x64xf32, #tpu.memory_space<any>>) dst(%51 : memref<1x64xf32, #tpu.memory_space<vmem>>)
      %c3 = arith.constant 3 : index
      %52 = memref.load %arg1[%c3] : memref<8xi32, #tpu.memory_space<smem>>
      %c0_i32_42 = arith.constant 0 : i32
      %53 = tpu.memref_slice %arg2[%52, %c0_i32_42] : memref<1000x64xf32, #tpu.memory_space<any>> -> memref<1x64xf32, #tpu.memory_space<any>>
      %c3_i32_43 = arith.constant 3 : i32
      %c0_i32_44 = arith.constant 0 : i32
      %54 = tpu.memref_slice %arg6[%c3_i32_43, %c0_i32_44] : memref<8x64xf32, #tpu.memory_space<vmem>> -> memref<1x64xf32, #tpu.memory_space<vmem>>
      tpu.enqueue_dma source(%53 : memref<1x64xf32, #tpu.memory_space<any>>) target(%54 : memref<1x64xf32, #tpu.memory_space<vmem>>) target_semaphore(%arg9 : memref<!tpu.dma_semaphore, #tpu.memory_space<semaphore_mem>>)
      %c0_i32_45 = arith.constant 0 : i32
      %55 = tpu.memref_slice %arg2[%52, %c0_i32_45] : memref<1000x64xf32, #tpu.memory_space<any>> -> memref<1x64xf32, #tpu.memory_space<any>>
      %c3_i32_46 = arith.constant 3 : i32
      %c0_i32_47 = arith.constant 0 : i32
      %56 = tpu.memref_slice %arg6[%c3_i32_46, %c0_i32_47] : memref<8x64xf32, #tpu.memory_space<vmem>> -> memref<1x64xf32, #tpu.memory_space<vmem>>
      tpu.wait_dma2 semaphore(%arg9 : memref<!tpu.dma_semaphore, #tpu.memory_space<semaphore_mem>>) src(%55 : memref<1x64xf32, #tpu.memory_space<any>>) dst(%56 : memref<1x64xf32, #tpu.memory_space<vmem>>)
      %c4 = arith.constant 4 : index
      %57 = memref.load %arg1[%c4] : memref<8xi32, #tpu.memory_space<smem>>
      %c0_i32_48 = arith.constant 0 : i32
      %58 = tpu.memref_slice %arg2[%57, %c0_i32_48] : memref<1000x64xf32, #tpu.memory_space<any>> -> memref<1x64xf32, #tpu.memory_space<any>>
      %c4_i32 = arith.constant 4 : i32
      %c0_i32_49 = arith.constant 0 : i32
      %59 = tpu.memref_slice %arg6[%c4_i32, %c0_i32_49] : memref<8x64xf32, #tpu.memory_space<vmem>> -> memref<1x64xf32, #tpu.memory_space<vmem>>
      tpu.enqueue_dma source(%58 : memref<1x64xf32, #tpu.memory_space<any>>) target(%59 : memref<1x64xf32, #tpu.memory_space<vmem>>) target_semaphore(%arg9 : memref<!tpu.dma_semaphore, #tpu.memory_space<semaphore_mem>>)
      %c0_i32_50 = arith.constant 0 : i32
      %60 = tpu.memref_slice %arg2[%57, %c0_i32_50] : memref<1000x64xf32, #tpu.memory_space<any>> -> memref<1x64xf32, #tpu.memory_space<any>>
      %c4_i32_51 = arith.constant 4 : i32
      %c0_i32_52 = arith.constant 0 : i32
      %61 = tpu.memref_slice %arg6[%c4_i32_51, %c0_i32_52] : memref<8x64xf32, #tpu.memory_space<vmem>> -> memref<1x64xf32, #tpu.memory_space<vmem>>
      tpu.wait_dma2 semaphore(%arg9 : memref<!tpu.dma_semaphore, #tpu.memory_space<semaphore_mem>>) src(%60 : memref<1x64xf32, #tpu.memory_space<any>>) dst(%61 : memref<1x64xf32, #tpu.memory_space<vmem>>)
      %c5 = arith.constant 5 : index
      %62 = memref.load %arg1[%c5] : memref<8xi32, #tpu.memory_space<smem>>
      %c0_i32_53 = arith.constant 0 : i32
      %63 = tpu.memref_slice %arg2[%62, %c0_i32_53] : memref<1000x64xf32, #tpu.memory_space<any>> -> memref<1x64xf32, #tpu.memory_space<any>>
      %c5_i32 = arith.constant 5 : i32
      %c0_i32_54 = arith.constant 0 : i32
      %64 = tpu.memref_slice %arg6[%c5_i32, %c0_i32_54] : memref<8x64xf32, #tpu.memory_space<vmem>> -> memref<1x64xf32, #tpu.memory_space<vmem>>
      tpu.enqueue_dma source(%63 : memref<1x64xf32, #tpu.memory_space<any>>) target(%64 : memref<1x64xf32, #tpu.memory_space<vmem>>) target_semaphore(%arg9 : memref<!tpu.dma_semaphore, #tpu.memory_space<semaphore_mem>>)
      %c0_i32_55 = arith.constant 0 : i32
      %65 = tpu.memref_slice %arg2[%62, %c0_i32_55] : memref<1000x64xf32, #tpu.memory_space<any>> -> memref<1x64xf32, #tpu.memory_space<any>>
      %c5_i32_56 = arith.constant 5 : i32
      %c0_i32_57 = arith.constant 0 : i32
      %66 = tpu.memref_slice %arg6[%c5_i32_56, %c0_i32_57] : memref<8x64xf32, #tpu.memory_space<vmem>> -> memref<1x64xf32, #tpu.memory_space<vmem>>
      tpu.wait_dma2 semaphore(%arg9 : memref<!tpu.dma_semaphore, #tpu.memory_space<semaphore_mem>>) src(%65 : memref<1x64xf32, #tpu.memory_space<any>>) dst(%66 : memref<1x64xf32, #tpu.memory_space<vmem>>)
      %c6 = arith.constant 6 : index
      %67 = memref.load %arg1[%c6] : memref<8xi32, #tpu.memory_space<smem>>
      %c0_i32_58 = arith.constant 0 : i32
      %68 = tpu.memref_slice %arg2[%67, %c0_i32_58] : memref<1000x64xf32, #tpu.memory_space<any>> -> memref<1x64xf32, #tpu.memory_space<any>>
      %c6_i32 = arith.constant 6 : i32
      %c0_i32_59 = arith.constant 0 : i32
      %69 = tpu.memref_slice %arg6[%c6_i32, %c0_i32_59] : memref<8x64xf32, #tpu.memory_space<vmem>> -> memref<1x64xf32, #tpu.memory_space<vmem>>
      tpu.enqueue_dma source(%68 : memref<1x64xf32, #tpu.memory_space<any>>) target(%69 : memref<1x64xf32, #tpu.memory_space<vmem>>) target_semaphore(%arg9 : memref<!tpu.dma_semaphore, #tpu.memory_space<semaphore_mem>>)
      %c0_i32_60 = arith.constant 0 : i32
      %70 = tpu.memref_slice %arg2[%67, %c0_i32_60] : memref<1000x64xf32, #tpu.memory_space<any>> -> memref<1x64xf32, #tpu.memory_space<any>>
      %c6_i32_61 = arith.constant 6 : i32
      %c0_i32_62 = arith.constant 0 : i32
      %71 = tpu.memref_slice %arg6[%c6_i32_61, %c0_i32_62] : memref<8x64xf32, #tpu.memory_space<vmem>> -> memref<1x64xf32, #tpu.memory_space<vmem>>
      tpu.wait_dma2 semaphore(%arg9 : memref<!tpu.dma_semaphore, #tpu.memory_space<semaphore_mem>>) src(%70 : memref<1x64xf32, #tpu.memory_space<any>>) dst(%71 : memref<1x64xf32, #tpu.memory_space<vmem>>)
      %c7 = arith.constant 7 : index
      %72 = memref.load %arg1[%c7] : memref<8xi32, #tpu.memory_space<smem>>
      %c0_i32_63 = arith.constant 0 : i32
      %73 = tpu.memref_slice %arg2[%72, %c0_i32_63] : memref<1000x64xf32, #tpu.memory_space<any>> -> memref<1x64xf32, #tpu.memory_space<any>>
      %c7_i32 = arith.constant 7 : i32
      %c0_i32_64 = arith.constant 0 : i32
      %74 = tpu.memref_slice %arg6[%c7_i32, %c0_i32_64] : memref<8x64xf32, #tpu.memory_space<vmem>> -> memref<1x64xf32, #tpu.memory_space<vmem>>
      tpu.enqueue_dma source(%73 : memref<1x64xf32, #tpu.memory_space<any>>) target(%74 : memref<1x64xf32, #tpu.memory_space<vmem>>) target_semaphore(%arg9 : memref<!tpu.dma_semaphore, #tpu.memory_space<semaphore_mem>>)
      %c0_i32_65 = arith.constant 0 : i32
      %75 = tpu.memref_slice %arg2[%72, %c0_i32_65] : memref<1000x64xf32, #tpu.memory_space<any>> -> memref<1x64xf32, #tpu.memory_space<any>>
      %c7_i32_66 = arith.constant 7 : i32
      %c0_i32_67 = arith.constant 0 : i32
      %76 = tpu.memref_slice %arg6[%c7_i32_66, %c0_i32_67] : memref<8x64xf32, #tpu.memory_space<vmem>> -> memref<1x64xf32, #tpu.memory_space<vmem>>
      tpu.wait_dma2 semaphore(%arg9 : memref<!tpu.dma_semaphore, #tpu.memory_space<semaphore_mem>>) src(%75 : memref<1x64xf32, #tpu.memory_space<any>>) dst(%76 : memref<1x64xf32, #tpu.memory_space<vmem>>)
    } else {
    }
    %c0 = arith.constant 0 : index
    %c0_1 = arith.constant 0 : index
    %3 = vector.load %arg6[%c0, %c0_1] : memref<8x64xf32, #tpu.memory_space<vmem>>, vector<8x64xf32>
    %4 = arith.truncf %3 : vector<8x64xf32> to vector<8x64xbf16>
    %c0_2 = arith.constant 0 : index
    %c0_3 = arith.constant 0 : index
    %5 = vector.load %arg3[%c0_2, %c0_3] : memref<256x64xbf16, #tpu.memory_space<vmem>>, vector<256x64xbf16>
    %cst = arith.constant dense<0.000000e+00> : vector<8x256xf32>
    %6 = tpu.matmul %4, %5, %cst {dimension_numbers = #tpu.dot_dimension_numbers<[1], [1], [0], [0], [0, 0, 1, 0], [], []>} : vector<8x64xbf16>, vector<256x64xbf16>, vector<8x256xf32> -> vector<8x256xf32>
    %c0_4 = arith.constant 0 : index
    %c0_5 = arith.constant 0 : index
    %7 = vector.load %arg4[%c0_4, %c0_5] : memref<1x256xf32, #tpu.memory_space<vmem>>, vector<1x256xf32>
    %8 = vector.broadcast %7 : vector<1x256xf32> to vector<8x256xf32>
    %9 = arith.addf %6, %8 : vector<8x256xf32>
    %10 = arith.index_cast %arg0 : i32 to index
    %c0_6 = arith.constant 0 : index
    %c0_7 = arith.constant 0 : index
    %11 = vector.load %arg5[%10, %c0_6, %c0_7] : memref<4x8x256xf32, #tpu.memory_space<vmem>>, vector<1x8x256xf32>
    %12 = vector.shape_cast %11 : vector<1x8x256xf32> to vector<8x256xf32>
    %13 = vector.shape_cast %9 : vector<8x256xf32> to vector<1x8x256xf32>
    tpu.vector_store %arg5[%10, %c0_6, %c0_7], %13 {strides = array<i32>} : memref<4x8x256xf32, #tpu.memory_space<vmem>>, vector<1x8x256xf32>,
    %c0_8 = arith.constant 0 : index
    %c0_9 = arith.constant 0 : index
    %14 = vector.load %arg7[%c0_8, %c0_9] : memref<8x1xf32, #tpu.memory_space<vmem>>, vector<8x1xf32>
    %cst_10 = arith.constant dense<0xFF800000> : vector<8xf32>
    %15 = vector.multi_reduction <maximumf>, %9, %cst_10 [1] : vector<8x256xf32> to vector<8xf32>
    %16 = vector.shape_cast %15 : vector<8xf32> to vector<8x1xf32>
    %17 = arith.maximumf %14, %16 : vector<8x1xf32>
    %c0_11 = arith.constant 0 : index
    %c0_12 = arith.constant 0 : index
    %18 = vector.load %arg8[%c0_11, %c0_12] : memref<8x1xf32, #tpu.memory_space<vmem>>, vector<8x1xf32>
    %19 = arith.subf %14, %17 : vector<8x1xf32>
    %20 = math.exp %19 : vector<8x1xf32>
    %21 = arith.mulf %18, %20 : vector<8x1xf32>
    %22 = vector.broadcast %17 : vector<8x1xf32> to vector<8x256xf32>
    %23 = arith.subf %9, %22 : vector<8x256xf32>
    %24 = math.exp %23 : vector<8x256xf32>
    %cst_13 = arith.constant dense<0.000000e+00> : vector<8xf32>
    %25 = vector.multi_reduction <add>, %24, %cst_13 [1] : vector<8x256xf32> to vector<8xf32>
    %26 = vector.shape_cast %25 : vector<8xf32> to vector<8x1xf32>
    %27 = arith.addf %21, %26 : vector<8x1xf32>
    %c0_14 = arith.constant 0 : index
    %c0_15 = arith.constant 0 : index
    %28 = vector.load %arg8[%c0_14, %c0_15] : memref<8x1xf32, #tpu.memory_space<vmem>>, vector<8x1xf32>
    tpu.vector_store %arg8[%c0_14, %c0_15], %27 {strides = array<i32>} : memref<8x1xf32, #tpu.memory_space<vmem>>, vector<8x1xf32>,
    %c0_16 = arith.constant 0 : index
    %c0_17 = arith.constant 0 : index
    %29 = vector.load %arg7[%c0_16, %c0_17] : memref<8x1xf32, #tpu.memory_space<vmem>>, vector<8x1xf32>
    tpu.vector_store %arg7[%c0_16, %c0_17], %17 {strides = array<i32>} : memref<8x1xf32, #tpu.memory_space<vmem>>, vector<8x1xf32>,
    %c3_i32 = arith.constant 3 : i32
    %30 = arith.cmpi eq, %arg0, %c3_i32 : i32
    %31 = arith.extui %30 : i1 to i32
    %c0_i32_18 = arith.constant 0 : i32
    %32 = arith.cmpi ne, %31, %c0_i32_18 : i32
    scf.if %32 {
      %c0_19 = arith.constant 0 : index
      %c0_20 = arith.constant 0 : index
      %33 = vector.load %arg7[%c0_19, %c0_20] : memref<8x1xf32, #tpu.memory_space<vmem>>, vector<8x1xf32>
      %c0_21 = arith.constant 0 : index
      %c0_22 = arith.constant 0 : index
      %34 = vector.load %arg8[%c0_21, %c0_22] : memref<8x1xf32, #tpu.memory_space<vmem>>, vector<8x1xf32>
      %35 = tpu.reciprocal %34 {approx = true} : vector<8x1xf32> -> vector<8x1xf32>
      %c0_23 = arith.constant 0 : index
      %c0_24 = arith.constant 0 : index
      %c0_25 = arith.constant 0 : index
      %36 = vector.load %arg5[%c0_23, %c0_24, %c0_25] : memref<4x8x256xf32, #tpu.memory_space<vmem>>, vector<4x8x256xf32>
      %37 = vector.shape_cast %33 : vector<8x1xf32> to vector<1x8x1xf32>
      %38 = vector.broadcast %37 : vector<1x8x1xf32> to vector<4x8x256xf32>
      %39 = arith.subf %36, %38 : vector<4x8x256xf32>
      %40 = math.exp %39 : vector<4x8x256xf32>
      %41 = vector.shape_cast %35 : vector<8x1xf32> to vector<1x8x1xf32>
      %42 = vector.broadcast %41 : vector<1x8x1xf32> to vector<4x8x256xf32>
      %43 = arith.mulf %40, %42 : vector<4x8x256xf32>
      %c0_26 = arith.constant 0 : index
      %c0_27 = arith.constant 0 : index
      %c0_28 = arith.constant 0 : index
      %44 = vector.load %arg5[%c0_26, %c0_27, %c0_28] : memref<4x8x256xf32, #tpu.memory_space<vmem>>, vector<4x8x256xf32>
      tpu.vector_store %arg5[%c0_26, %c0_27, %c0_28], %43 {strides = array<i32>} : memref<4x8x256xf32, #tpu.memory_space<vmem>>, vector<4x8x256xf32>,
    } else {
    }
    return
  }
  func.func @transform_1(%arg0: i32, %arg1: memref<8xi32, #tpu.memory_space<smem>>) -> (i32, i32) {
    %c0_i32 = arith.constant 0 : i32
    %c0_i32_0 = arith.constant 0 : i32
    return %arg0, %c0_i32 : i32, i32
  }
  func.func @transform_2(%arg0: i32, %arg1: memref<8xi32, #tpu.memory_space<smem>>) -> (i32, i32) {
    %c0_i32 = arith.constant 0 : i32
    %c0_i32_0 = arith.constant 0 : i32
    return %c0_i32, %arg0 : i32, i32
  }
  func.func @transform_3(%arg0: i32, %arg1: memref<8xi32, #tpu.memory_space<smem>>) -> (i32, i32, i32) {
    %c0_i32 = arith.constant 0 : i32
    %c0_i32_0 = arith.constant 0 : i32
    %c0_i32_1 = arith.constant 0 : i32
    %c0_i32_2 = arith.constant 0 : i32
    return %c0_i32, %c0_i32_0, %c0_i32_1 : i32, i32, i32
  }
}

</mosaic_0001>

<llo_original>
// kernel: tpu_custom_call.1
$region0: #{tpu_custom_call.1}
  #allocation0 [shape = 'u32[]', space=smem, size = 0x4, offset = 0x4, fixed_abs, tag = 'smem constant byte address 0x4 - core index']
  #allocation1 [shape = 'u32[144,128]{1,0:T(1,128)}', space=vmem, size = 0x12000, scoped, tag = 'internal scratch']
  #allocation2 [shape = 'f32[8,64]{1,0:T(8,128)}', space=vmem, size = 0x1000, scoped, tag = 'scratch operand']
  #allocation3 [shape = 'f32[8,1]{1,0:T(8,128)}', space=vmem, size = 0x1000, scoped, tag = 'scratch operand']
  #allocation4 [shape = 'f32[8,1]{1,0:T(8,128)}', space=vmem, size = 0x1000, scoped, tag = 'scratch operand']
  #allocation5 [shape = 's32[1]{0}', space=sflag, size = 0x4, scoped, tag = 'scratch operand']
  #allocation6 [shape = 's32[1]{0}', space=sflag, size = 0x4, scoped, tag = 'scoped memory for tpu_custom_call.1']
  #allocation7 [shape = 'u8[512]{0}', space=smem, size = 0x200, scoped, tag = 'prefetched SMEM operand 0']
  #allocation10 [shape = 's32[]', space=sflag, size = 0x4, offset = 0, fixed_abs, tag = 'sflag constant byte address 0x0 - dummy sync flag']
  #allocation11 [shape = 's32[]', space=sflag, size = 0x4, offset = 0, fixed_abs, tag = 'sflag constant byte address 0x0 - dummy sync flag']
  #allocation12 [shape = 's32[]', space=sflag, size = 0x4, offset = 0, fixed_abs, tag = 'sflag constant byte address 0x0 - dummy sync flag']
  #allocation13 [shape = 's32[]', space=sflag, size = 0x4, offset = 0, fixed_abs, tag = 'sflag constant byte address 0x0 - dummy sync flag']
  #allocation14 [shape = 's32[]', space=sflag, size = 0x4, offset = 0, fixed_abs, tag = 'sflag constant byte address 0x0 - dummy sync flag']
  #allocation15 [shape = 's32[]', space=sflag, size = 0x4, offset = 0, fixed_abs, tag = 'sflag constant byte address 0x0 - dummy sync flag']
  #allocation16 [shape = 's32[]', space=sflag, size = 0x4, offset = 0, fixed_abs, tag = 'sflag constant byte address 0x0 - dummy sync flag']
  #allocation17 [shape = 's32[]', space=sflag, size = 0x4, offset = 0, fixed_abs, tag = 'sflag constant byte address 0x0 - dummy sync flag']
  %s0 = inlined_call_operand.vmem [shape: s32[8], index: 0, kind: input, shape index: {}]
  %s1 = inlined_call_operand.vmem [shape: f32[1000,64], index: 1, kind: input, shape index: {}]
  %s2 = inlined_call_operand.vmem [shape: bf16[1024,64], index: 2, kind: input, shape index: {}]
  %s3 = inlined_call_operand.vmem [shape: f32[1,1024], index: 3, kind: input, shape index: {}]
  %s4 = inlined_call_operand.hbm [shape: f32[4,8,256], index: 4, kind: output, shape index: {}]
  %s5 = sld [smem:[#allocation0]]
  $region289: #{tpu_custom_call.1} parent=0
    _
  %s7 = ssub.s32 1, %s5
  %s8 = scalar_select 0, %s7, %s5
  %s9 = sshll.u32 %s0, 4
  %s10 = int_to_ptr.vmem [resolvable:$true] %s9
  %12 = dma.vmem_to_smem %s10, 16, [#allocation7], [#allocation6]
  %13 = dma.done [#allocation6], 16
  %14 = sfence
  $region1: #{tpu_custom_call.1} parent=0
    #allocation8 [shape = 'u8[32768]{0}', space=vmem, size = 0x8000, scoped, tag = 'output window, operand 0, single buffered']
    #allocation9 [shape = 's32[2]{0}', space=sflag, size = 0x8, scoped, tag = 'scoped memory for tpu_custom_call.1']
    %15 = vsyncpa [#allocation9], 0
    loop: start=0, step=1, limit=6
    $region2: #{tpu_custom_call.1} parent=1 // loop_pre_header
      _
    $region3: #{tpu_custom_call.1} parent=1 // loop_header
      %s17 = sphi 0, %s21
      %p18 = scmp.ge.s32.totalorder %s17, 6
      %s27 = sphi 0, %s29
      %s30 = sphi 0, %s27
      %s31 = sphi 0, %s30
      %s47 = sphi 0, %s31
      %s53 = sphi 0, %s55
      %s56 = sphi 0, %s53
      %s57 = sphi 0, %s56
      %s73 = sphi 0, %s57
      %s77 = sphi 0, %s77
      %s79 = sphi 0, %s77
      %s80 = sphi 0, %s79
      %s94 = sphi 0, %s80
    $region4: #{tpu_custom_call.1} parent=1 // loop_header_branch
      %20 = sbr.rel (%p18) target = $region8
    $region5: #{tpu_custom_call.1} parent=1 // loop_body
      %s22 = ssub.s32 %s17, 1
      %s23 = ssub.s32 %s17, 2
      %s24 = sadd.s32 %s17, 1
      %s25 = ssub.s32 %s17, %s24
      %p26 = scmp.eq.s32.totalorder %s25, 0
      %s28 = sadd.s32 %s27, 1
      %s29 = scalar_select %p26, %s27, %s28
      %p32 = pneg %p26
      %p33 = scmp.eq.s32.totalorder %s17, 3
      %p34 = por %p32, %p33
      %p35 = scmp.ne.s32.totalorder %s27, %s30
      %p36 = scmp.eq.s32.totalorder %s17, 0
      %p37 = por %p35, %p36
      %p38 = scmp.ne.s32.totalorder %s27, %s30
      %p39 = scmp.eq.s32.totalorder %s22, 3
      %p40 = por %p38, %p39
      %p41 = scmp.ne.s32.totalorder %s30, %s31
      %p42 = scmp.eq.s32.totalorder %s22, 0
      %p43 = por %p41, %p42
      %p44 = scmp.ne.s32.totalorder %s30, %s31
      %p45 = scmp.eq.s32.totalorder %s23, 3
      %p46 = por %p44, %p45
      %p48 = scmp.ne.s32.totalorder %s31, %s47
      %p49 = scmp.eq.s32.totalorder %s23, 0
      %p50 = por %p48, %p49
      %s51 = ssub.s32 %s17, %s24
      %p52 = scmp.eq.s32.totalorder %s51, 0
      %s54 = sadd.s32 %s53, 1
      %s55 = scalar_select %p52, %s53, %s54
      %p58 = pneg %p52
      %p59 = scmp.eq.s32.totalorder %s17, 3
      %p60 = por %p58, %p59
      %p61 = scmp.ne.s32.totalorder %s53, %s56
      %p62 = scmp.eq.s32.totalorder %s17, 0
      %p63 = por %p61, %p62
      %p64 = scmp.ne.s32.totalorder %s53, %s56
      %p65 = scmp.eq.s32.totalorder %s22, 3
      %p66 = por %p64, %p65
      %p67 = scmp.ne.s32.totalorder %s56, %s57
      %p68 = scmp.eq.s32.totalorder %s22, 0
      %p69 = por %p67, %p68
      %p70 = scmp.ne.s32.totalorder %s56, %s57
      %p71 = scmp.eq.s32.totalorder %s23, 3
      %p72 = por %p70, %p71
      %p74 = scmp.ne.s32.totalorder %s57, %s73
      %p75 = scmp.eq.s32.totalorder %s23, 0
      %p76 = por %p74, %p75
      %s78 = sadd.s32 %s77, 1
      %p81 = scmp.eq.s32.totalorder %s17, 3
      %p82 = scmp.ne.s32.totalorder %s77, %s79
      %p83 = scmp.eq.s32.totalorder %s17, 0
      %p84 = por %p82, %p83
      %p85 = scmp.ne.s32.totalorder %s77, %s79
      %p86 = scmp.eq.s32.totalorder %s22, 3
      %p87 = por %p85, %p86
      %p88 = scmp.ne.s32.totalorder %s79, %s80
      %p89 = scmp.eq.s32.totalorder %s22, 0
      %p90 = por %p88, %p89
      %p91 = scmp.ne.s32.totalorder %s79, %s80
      %p92 = scmp.eq.s32.totalorder %s23, 3
      %p93 = por %p91, %p92
      %p95 = scmp.ne.s32.totalorder %s80, %s94
      %p96 = scmp.eq.s32.totalorder %s23, 0
      %p97 = por %p95, %p96
      %p98 = scmp.le.s32.totalorder 1, %s17
      %p99 = scmp.lt.s32.totalorder %s17, 5
      %p100 = pnand %p98, %p99
      %p101 = pneg %p100
      // Predicated region
      $region9: #{tpu_custom_call.1} parent=5 // pred_check
        _
      $region10: #{tpu_custom_call.1} parent=5 // pred_check_branch
        %103 = sbr.rel (%p100) target = $region12
      $region11: #{tpu_custom_call.1} parent=5 // pred_region
        %s104 = ssub.s32 %s17, 1
      $region12: #{tpu_custom_call.1} parent=5 // pred_fallthru
        _
      %p105 = scmp.lt.s32.totalorder %s17, 4
      // Predicated region
      $region13: #{tpu_custom_call.1} parent=5 // pred_check
        %p106 = pneg %p105
      $region14: #{tpu_custom_call.1} parent=5 // pred_check_branch
        %108 = sbr.rel (%p106) target = $region16
      $region15: #{tpu_custom_call.1} parent=5 // pred_region
        // Predicated region
        $region17: #{tpu_custom_call.1} parent=15 // pred_check
          %p109 = pneg %p37
        $region18: #{tpu_custom_call.1} parent=15 // pred_check_branch
          %111 = sbr.rel (%p109) target = $region20
        $region19: #{tpu_custom_call.1} parent=15 // pred_region
          %s112 = smul.u32 32, %s17
          %p113 = scmp.lt.s32.totalorder %s112, 127
          %s114 = scalar_select %p113, %s112, 127
          %s115 = smul.addr %s114, 4
          %s116 = scalar_lea.vmem %s2, %s115
          %s117 = smul.u32 32, %s17
        $region20: #{tpu_custom_call.1} parent=15 // pred_fallthru
          _
        // Predicated region
        $region21: #{tpu_custom_call.1} parent=15 // pred_check
          %p118 = pneg %p63
        $region22: #{tpu_custom_call.1} parent=15 // pred_check_branch
          %120 = sbr.rel (%p118) target = $region24
        $region23: #{tpu_custom_call.1} parent=15 // pred_region
          %s121 = smul.u32 2, %s17
          %p122 = scmp.lt.s32.totalorder %s121, 7
          %s123 = scalar_select %p122, %s121, 7
          %s124 = scalar_lea.vmem %s3, %s123
          %s125 = smul.u32 2, %s17
        $region24: #{tpu_custom_call.1} parent=15 // pred_fallthru
          _
      $region16: #{tpu_custom_call.1} parent=5 // pred_fallthru
        _
      %p126 = scmp.le.s32.totalorder 1, %s17
      %p127 = scmp.lt.s32.totalorder %s17, 5
      %p128 = pnand %p126, %p127
      %p129 = pneg %p128
      // Predicated region
      $region25: #{tpu_custom_call.1} parent=5 // pred_check
        _
      $region26: #{tpu_custom_call.1} parent=5 // pred_check_branch
        %131 = sbr.rel (%p128) target = $region28
      $region27: #{tpu_custom_call.1} parent=5 // pred_region
        %s132 = ssub.s32 %s17, 1
        %s133 = smul.u32 32, %s22
        %p134 = scmp.lt.s32.totalorder %s133, 127
        %s135 = scalar_select %p134, %s133, 127
        %s136 = smul.addr %s135, 4
        %s137 = scalar_lea.vmem %s2, %s136
        %p138 = pneg %p43
        %p139 = pneg %p40
        %s140 = smul.u32 2, %s22
        %p141 = scmp.lt.s32.totalorder %s140, 7
        %s142 = scalar_select %p141, %s140, 7
        %s143 = scalar_lea.vmem %s3, %s142
        %p144 = pneg %p69
        %p145 = pneg %p66
        %p146 = pneg %p90
        %p147 = pneg %p87
        %s148 = smul.u32 32, %s22
        %p149 = scmp.lt.s32.totalorder %s148, 127
        %s150 = scalar_select %p149, %s148, 127
        %s151 = smul.addr %s150, 4
        %s152 = scalar_lea.vmem %s2, %s151
        %s153 = smul.u32 32, %s22
        %s154 = smul.u32 2, %s22
        %p155 = scmp.lt.s32.totalorder %s154, 7
        %s156 = scalar_select %p155, %s154, 7
        %s157 = scalar_lea.vmem %s3, %s156
        %s158 = smul.u32 2, %s22
        %p160 = scmp.eq.s32.totalorder %s22, 0
        // Predicated region
        $region29: #{tpu_custom_call.1} parent=27 // pred_check
          %p161 = pneg %p160
        $region30: #{tpu_custom_call.1} parent=27 // pred_check_branch
          %163 = sbr.rel (%p161) target = $region32
        $region31: #{tpu_custom_call.1} parent=27 // pred_region
          %vm164 = vcmask 7168
          %165 = vst.msk [vmem:[#allocation3] sm:$0xff] %vm164, -inf
          %166 = vst.msk [vmem:[#allocation4] sm:$0xff] %vm164, 0.0
          %s167 = sld [smem:[#allocation7]]
          %s168 = scalar_lea.vmem %s1, %s167
          %p170 = scmp.lt.u32.totalorder 1, 8
          %p171 = pneg %p170
          // Predicated region
          $region33: #{tpu_custom_call.1} parent=31 // pred_check
            _
          $region34: #{tpu_custom_call.1} parent=31 // pred_check_branch
            %173 = sbr.rel (%p170) target = $region36
          $region35: #{tpu_custom_call.1} parent=31 // pred_region
            %s188 = sand.u32 1, 7
            %p189 = scmp.eq.s32.totalorder %s188, 0
            %p190 = pneg %p189
            // Predicated region
            $region48: #{tpu_custom_call.1} parent=35 // pred_check
              _
            $region49: #{tpu_custom_call.1} parent=35 // pred_check_branch
              %192 = sbr.rel (%p189) target = $region51
            $region50: #{tpu_custom_call.1} parent=35 // pred_region
              %s193 = sand.u32 1, 7
              %s194 = ssub.s32 1, %s193
              %s195 = scalar_lea.vmem %s168, %s194
              %s196 = ssub.s32 1, %s193
              %s197 = scalar_lea.vmem [#allocation2], %s196
              %s198 = sshllo.u32 0, %s193
              loop: start=0, step=1, limit=1
              $region52: #{tpu_custom_call.1} parent=50 // loop_pre_header
                _
              $region53: #{tpu_custom_call.1} parent=50 // loop_header
                %s200 = sphi 0, %s204
                %p201 = scmp.ge.s32.totalorder %s200, 1
                %s205 = sphi %s195, %s195
                %s206 = sphi %s197, %s197
              $region54: #{tpu_custom_call.1} parent=50 // loop_header_branch
                %203 = sbr.rel (%p201) target = $region58
              $region55: #{tpu_custom_call.1} parent=50 // loop_body
                %v207 = vld [vmem:[%s205] sm:%s198]
                %208 = vst [vmem:[%s206] sm:%s198] %v207
              $region56: #{tpu_custom_call.1} parent=50 // loop_footer
                %s204 = sadd.s32 1, %s200
              $region57: #{tpu_custom_call.1} parent=50 // loop_footer_branch
                %199 = sbr.rel target = $region53
              $region58: #{tpu_custom_call.1} parent=50 // loop_exit
                _
            $region51: #{tpu_custom_call.1} parent=35 // pred_fallthru
              _
          $region36: #{tpu_custom_call.1} parent=31 // pred_fallthru
            _
          // Predicated region
          $region37: #{tpu_custom_call.1} parent=31 // pred_check
            %p174 = pneg %p170
          $region38: #{tpu_custom_call.1} parent=31 // pred_check_branch
            %176 = sbr.rel (%p174) target = $region40
          $region39: #{tpu_custom_call.1} parent=31 // pred_region
            %s177 = sshllo.u32 0, 1
            loop: start=0, step=1, limit=1
            $region41: #{tpu_custom_call.1} parent=39 // loop_pre_header
              _
            $region42: #{tpu_custom_call.1} parent=39 // loop_header
              %s179 = sphi 0, %s183
              %p180 = scmp.ge.s32.totalorder %s179, 1
              %s184 = sphi %s168, %s168
              %s185 = sphi [#allocation2], [#allocation2]
            $region43: #{tpu_custom_call.1} parent=39 // loop_header_branch
              %182 = sbr.rel (%p180) target = $region47
            $region44: #{tpu_custom_call.1} parent=39 // loop_body
              %v186 = vld [vmem:[%s184] sm:%s177]
              %187 = vst [vmem:[%s185] sm:%s177] %v186
            $region45: #{tpu_custom_call.1} parent=39 // loop_footer
              %s183 = sadd.s32 1, %s179
            $region46: #{tpu_custom_call.1} parent=39 // loop_footer_branch
              %178 = sbr.rel target = $region42
            $region47: #{tpu_custom_call.1} parent=39 // loop_exit
              _
          $region40: #{tpu_custom_call.1} parent=31 // pred_fallthru
            _
          // Predicated region
          $region59: #{tpu_custom_call.1} parent=31 // pred_check
            _
          $region60: #{tpu_custom_call.1} parent=31 // pred_check_branch
            %211 = sbr.rel (0) target = $region62
          $region61: #{tpu_custom_call.1} parent=31 // pred_region
            %212 = vsyncadd [#allocation5], 16
          $region62: #{tpu_custom_call.1} parent=31 // pred_fallthru
            _
          %s213 = smul.u32 1, 1
          %s214 = sshll.u32 %s213, 4
          %215 = dma.done [#allocation5], %s214
          %s216 = sld [smem:[#allocation7 + $0x1]]
          %s217 = scalar_lea.vmem %s1, %s216
          %s218 = scalar_lea.vmem [#allocation2], 1
          %p220 = scmp.lt.u32.totalorder 1, 8
          %p221 = pneg %p220
          // Predicated region
          $region63: #{tpu_custom_call.1} parent=31 // pred_check
            _
          $region64: #{tpu_custom_call.1} parent=31 // pred_check_branch
            %223 = sbr.rel (%p220) target = $region66
          $region65: #{tpu_custom_call.1} parent=31 // pred_region
            %s238 = sand.u32 1, 7
            %p239 = scmp.eq.s32.totalorder %s238, 0
            %p240 = pneg %p239
            // Predicated region
            $region78: #{tpu_custom_call.1} parent=65 // pred_check
              _
            $region79: #{tpu_custom_call.1} parent=65 // pred_check_branch
              %242 = sbr.rel (%p239) target = $region81
            $region80: #{tpu_custom_call.1} parent=65 // pred_region
              %s243 = sand.u32 1, 7
              %s244 = ssub.s32 1, %s243
              %s245 = scalar_lea.vmem %s217, %s244
              %s246 = ssub.s32 1, %s243
              %s247 = scalar_lea.vmem %s218, %s246 [#allocation2]
              %s248 = sshllo.u32 0, %s243
              loop: start=0, step=1, limit=1
              $region82: #{tpu_custom_call.1} parent=80 // loop_pre_header
                _
              $region83: #{tpu_custom_call.1} parent=80 // loop_header
                %s250 = sphi 0, %s254
                %p251 = scmp.ge.s32.totalorder %s250, 1
                %s255 = sphi %s245, %s245
                %s256 = sphi %s247, %s247
              $region84: #{tpu_custom_call.1} parent=80 // loop_header_branch
                %253 = sbr.rel (%p251) target = $region88
              $region85: #{tpu_custom_call.1} parent=80 // loop_body
                %v257 = vld [vmem:[%s255] sm:%s248]
                %258 = vst [vmem:[%s256] sm:%s248] %v257
              $region86: #{tpu_custom_call.1} parent=80 // loop_footer
                %s254 = sadd.s32 1, %s250
              $region87: #{tpu_custom_call.1} parent=80 // loop_footer_branch
                %249 = sbr.rel target = $region83
              $region88: #{tpu_custom_call.1} parent=80 // loop_exit
                _
            $region81: #{tpu_custom_call.1} parent=65 // pred_fallthru
              _
          $region66: #{tpu_custom_call.1} parent=31 // pred_fallthru
            _
          // Predicated region
          $region67: #{tpu_custom_call.1} parent=31 // pred_check
            %p224 = pneg %p220
          $region68: #{tpu_custom_call.1} parent=31 // pred_check_branch
            %226 = sbr.rel (%p224) target = $region70
          $region69: #{tpu_custom_call.1} parent=31 // pred_region
            %s227 = sshllo.u32 0, 1
            loop: start=0, step=1, limit=1
            $region71: #{tpu_custom_call.1} parent=69 // loop_pre_header
              _
            $region72: #{tpu_custom_call.1} parent=69 // loop_header
              %s229 = sphi 0, %s233
              %p230 = scmp.ge.s32.totalorder %s229, 1
              %s234 = sphi %s217, %s217
              %s235 = sphi %s218, %s218
            $region73: #{tpu_custom_call.1} parent=69 // loop_header_branch
              %232 = sbr.rel (%p230) target = $region77
            $region74: #{tpu_custom_call.1} parent=69 // loop_body
              %v236 = vld [vmem:[%s234] sm:%s227]
              %237 = vst [vmem:[%s235] sm:%s227] %v236
            $region75: #{tpu_custom_call.1} parent=69 // loop_footer
              %s233 = sadd.s32 1, %s229
            $region76: #{tpu_custom_call.1} parent=69 // loop_footer_branch
              %228 = sbr.rel target = $region72
            $region77: #{tpu_custom_call.1} parent=69 // loop_exit
              _
          $region70: #{tpu_custom_call.1} parent=31 // pred_fallthru
            _
          // Predicated region
          $region89: #{tpu_custom_call.1} parent=31 // pred_check
            _
          $region90: #{tpu_custom_call.1} parent=31 // pred_check_branch
            %261 = sbr.rel (0) target = $region92
          $region91: #{tpu_custom_call.1} parent=31 // pred_region
            %262 = vsyncadd [#allocation5], 16
          $region92: #{tpu_custom_call.1} parent=31 // pred_fallthru
            _
          %s263 = sshll.u32 %s213, 4
          %264 = dma.done [#allocation5], %s263
          %s265 = sld [smem:[#allocation7 + $0x2]]
          %s266 = scalar_lea.vmem %s1, %s265
          %s267 = scalar_lea.vmem [#allocation2], 2
          %p269 = scmp.lt.u32.totalorder 1, 8
          %p270 = pneg %p269
          // Predicated region
          $region93: #{tpu_custom_call.1} parent=31 // pred_check
            _
          $region94: #{tpu_custom_call.1} parent=31 // pred_check_branch
            %272 = sbr.rel (%p269) target = $region96
          $region95: #{tpu_custom_call.1} parent=31 // pred_region
            %s287 = sand.u32 1, 7
            %p288 = scmp.eq.s32.totalorder %s287, 0
            %p289 = pneg %p288
            // Predicated region
            $region108: #{tpu_custom_call.1} parent=95 // pred_check
              _
            $region109: #{tpu_custom_call.1} parent=95 // pred_check_branch
              %291 = sbr.rel (%p288) target = $region111
            $region110: #{tpu_custom_call.1} parent=95 // pred_region
              %s292 = sand.u32 1, 7
              %s293 = ssub.s32 1, %s292
              %s294 = scalar_lea.vmem %s266, %s293
              %s295 = ssub.s32 1, %s292
              %s296 = scalar_lea.vmem %s267, %s295 [#allocation2]
              %s297 = sshllo.u32 0, %s292
              loop: start=0, step=1, limit=1
              $region112: #{tpu_custom_call.1} parent=110 // loop_pre_header
                _
              $region113: #{tpu_custom_call.1} parent=110 // loop_header
                %s299 = sphi 0, %s303
                %p300 = scmp.ge.s32.totalorder %s299, 1
                %s304 = sphi %s294, %s294
                %s305 = sphi %s296, %s296
              $region114: #{tpu_custom_call.1} parent=110 // loop_header_branch
                %302 = sbr.rel (%p300) target = $region118
              $region115: #{tpu_custom_call.1} parent=110 // loop_body
                %v306 = vld [vmem:[%s304] sm:%s297]
                %307 = vst [vmem:[%s305] sm:%s297] %v306
              $region116: #{tpu_custom_call.1} parent=110 // loop_footer
                %s303 = sadd.s32 1, %s299
              $region117: #{tpu_custom_call.1} parent=110 // loop_footer_branch
                %298 = sbr.rel target = $region113
              $region118: #{tpu_custom_call.1} parent=110 // loop_exit
                _
            $region111: #{tpu_custom_call.1} parent=95 // pred_fallthru
              _
          $region96: #{tpu_custom_call.1} parent=31 // pred_fallthru
            _
          // Predicated region
          $region97: #{tpu_custom_call.1} parent=31 // pred_check
            %p273 = pneg %p269
          $region98: #{tpu_custom_call.1} parent=31 // pred_check_branch
            %275 = sbr.rel (%p273) target = $region100
          $region99: #{tpu_custom_call.1} parent=31 // pred_region
            %s276 = sshllo.u32 0, 1
            loop: start=0, step=1, limit=1
            $region101: #{tpu_custom_call.1} parent=99 // loop_pre_header
              _
            $region102: #{tpu_custom_call.1} parent=99 // loop_header
              %s278 = sphi 0, %s282
              %p279 = scmp.ge.s32.totalorder %s278, 1
              %s283 = sphi %s266, %s266
              %s284 = sphi %s267, %s267
            $region103: #{tpu_custom_call.1} parent=99 // loop_header_branch
              %281 = sbr.rel (%p279) target = $region107
            $region104: #{tpu_custom_call.1} parent=99 // loop_body
              %v285 = vld [vmem:[%s283] sm:%s276]
              %286 = vst [vmem:[%s284] sm:%s276] %v285
            $region105: #{tpu_custom_call.1} parent=99 // loop_footer
              %s282 = sadd.s32 1, %s278
            $region106: #{tpu_custom_call.1} parent=99 // loop_footer_branch
              %277 = sbr.rel target = $region102
            $region107: #{tpu_custom_call.1} parent=99 // loop_exit
              _
          $region100: #{tpu_custom_call.1} parent=31 // pred_fallthru
            _
          // Predicated region
          $region119: #{tpu_custom_call.1} parent=31 // pred_check
            _
          $region120: #{tpu_custom_call.1} parent=31 // pred_check_branch
            %310 = sbr.rel (0) target = $region122
          $region121: #{tpu_custom_call.1} parent=31 // pred_region
            %311 = vsyncadd [#allocation5], 16
          $region122: #{tpu_custom_call.1} parent=31 // pred_fallthru
            _
          %s312 = sshll.u32 %s213, 4
          %313 = dma.done [#allocation5], %s312
          %s314 = sld [smem:[#allocation7 + $0x3]]
          %s315 = scalar_lea.vmem %s1, %s314
          %s316 = scalar_lea.vmem [#allocation2], 3
          %p318 = scmp.lt.u32.totalorder 1, 8
          %p319 = pneg %p318
          // Predicated region
          $region123: #{tpu_custom_call.1} parent=31 // pred_check
            _
          $region124: #{tpu_custom_call.1} parent=31 // pred_check_branch
            %321 = sbr.rel (%p318) target = $region126
          $region125: #{tpu_custom_call.1} parent=31 // pred_region
            %s336 = sand.u32 1, 7
            %p337 = scmp.eq.s32.totalorder %s336, 0
            %p338 = pneg %p337
            // Predicated region
            $region138: #{tpu_custom_call.1} parent=125 // pred_check
              _
            $region139: #{tpu_custom_call.1} parent=125 // pred_check_branch
              %340 = sbr.rel (%p337) target = $region141
            $region140: #{tpu_custom_call.1} parent=125 // pred_region
              %s341 = sand.u32 1, 7
              %s342 = ssub.s32 1, %s341
              %s343 = scalar_lea.vmem %s315, %s342
              %s344 = ssub.s32 1, %s341
              %s345 = scalar_lea.vmem %s316, %s344 [#allocation2]
              %s346 = sshllo.u32 0, %s341
              loop: start=0, step=1, limit=1
              $region142: #{tpu_custom_call.1} parent=140 // loop_pre_header
                _
              $region143: #{tpu_custom_call.1} parent=140 // loop_header
                %s348 = sphi 0, %s352
                %p349 = scmp.ge.s32.totalorder %s348, 1
                %s353 = sphi %s343, %s343
                %s354 = sphi %s345, %s345
              $region144: #{tpu_custom_call.1} parent=140 // loop_header_branch
                %351 = sbr.rel (%p349) target = $region148
              $region145: #{tpu_custom_call.1} parent=140 // loop_body
                %v355 = vld [vmem:[%s353] sm:%s346]
                %356 = vst [vmem:[%s354] sm:%s346] %v355
              $region146: #{tpu_custom_call.1} parent=140 // loop_footer
                %s352 = sadd.s32 1, %s348
              $region147: #{tpu_custom_call.1} parent=140 // loop_footer_branch
                %347 = sbr.rel target = $region143
              $region148: #{tpu_custom_call.1} parent=140 // loop_exit
                _
            $region141: #{tpu_custom_call.1} parent=125 // pred_fallthru
              _
          $region126: #{tpu_custom_call.1} parent=31 // pred_fallthru
            _
          // Predicated region
          $region127: #{tpu_custom_call.1} parent=31 // pred_check
            %p322 = pneg %p318
          $region128: #{tpu_custom_call.1} parent=31 // pred_check_branch
            %324 = sbr.rel (%p322) target = $region130
          $region129: #{tpu_custom_call.1} parent=31 // pred_region
            %s325 = sshllo.u32 0, 1
            loop: start=0, step=1, limit=1
            $region131: #{tpu_custom_call.1} parent=129 // loop_pre_header
              _
            $region132: #{tpu_custom_call.1} parent=129 // loop_header
              %s327 = sphi 0, %s331
              %p328 = scmp.ge.s32.totalorder %s327, 1
              %s332 = sphi %s315, %s315
              %s333 = sphi %s316, %s316
            $region133: #{tpu_custom_call.1} parent=129 // loop_header_branch
              %330 = sbr.rel (%p328) target = $region137
            $region134: #{tpu_custom_call.1} parent=129 // loop_body
              %v334 = vld [vmem:[%s332] sm:%s325]
              %335 = vst [vmem:[%s333] sm:%s325] %v334
            $region135: #{tpu_custom_call.1} parent=129 // loop_footer
              %s331 = sadd.s32 1, %s327
            $region136: #{tpu_custom_call.1} parent=129 // loop_footer_branch
              %326 = sbr.rel target = $region132
            $region137: #{tpu_custom_call.1} parent=129 // loop_exit
              _
          $region130: #{tpu_custom_call.1} parent=31 // pred_fallthru
            _
          // Predicated region
          $region149: #{tpu_custom_call.1} parent=31 // pred_check
            _
          $region150: #{tpu_custom_call.1} parent=31 // pred_check_branch
            %359 = sbr.rel (0) target = $region152
          $region151: #{tpu_custom_call.1} parent=31 // pred_region
            %360 = vsyncadd [#allocation5], 16
          $region152: #{tpu_custom_call.1} parent=31 // pred_fallthru
            _
          %s361 = sshll.u32 %s213, 4
          %362 = dma.done [#allocation5], %s361
          %s363 = sld [smem:[#allocation7 + $0x4]]
          %s364 = scalar_lea.vmem %s1, %s363
          %s365 = scalar_lea.vmem [#allocation2], 4
          %p367 = scmp.lt.u32.totalorder 1, 8
          %p368 = pneg %p367
          // Predicated region
          $region153: #{tpu_custom_call.1} parent=31 // pred_check
            _
          $region154: #{tpu_custom_call.1} parent=31 // pred_check_branch
            %370 = sbr.rel (%p367) target = $region156
          $region155: #{tpu_custom_call.1} parent=31 // pred_region
            %s385 = sand.u32 1, 7
            %p386 = scmp.eq.s32.totalorder %s385, 0
            %p387 = pneg %p386
            // Predicated region
            $region168: #{tpu_custom_call.1} parent=155 // pred_check
              _
            $region169: #{tpu_custom_call.1} parent=155 // pred_check_branch
              %389 = sbr.rel (%p386) target = $region171
            $region170: #{tpu_custom_call.1} parent=155 // pred_region
              %s390 = sand.u32 1, 7
              %s391 = ssub.s32 1, %s390
              %s392 = scalar_lea.vmem %s364, %s391
              %s393 = ssub.s32 1, %s390
              %s394 = scalar_lea.vmem %s365, %s393 [#allocation2]
              %s395 = sshllo.u32 0, %s390
              loop: start=0, step=1, limit=1
              $region172: #{tpu_custom_call.1} parent=170 // loop_pre_header
                _
              $region173: #{tpu_custom_call.1} parent=170 // loop_header
                %s397 = sphi 0, %s401
                %p398 = scmp.ge.s32.totalorder %s397, 1
                %s402 = sphi %s392, %s392
                %s403 = sphi %s394, %s394
              $region174: #{tpu_custom_call.1} parent=170 // loop_header_branch
                %400 = sbr.rel (%p398) target = $region178
              $region175: #{tpu_custom_call.1} parent=170 // loop_body
                %v404 = vld [vmem:[%s402] sm:%s395]
                %405 = vst [vmem:[%s403] sm:%s395] %v404
              $region176: #{tpu_custom_call.1} parent=170 // loop_footer
                %s401 = sadd.s32 1, %s397
              $region177: #{tpu_custom_call.1} parent=170 // loop_footer_branch
                %396 = sbr.rel target = $region173
              $region178: #{tpu_custom_call.1} parent=170 // loop_exit
                _
            $region171: #{tpu_custom_call.1} parent=155 // pred_fallthru
              _
          $region156: #{tpu_custom_call.1} parent=31 // pred_fallthru
            _
          // Predicated region
          $region157: #{tpu_custom_call.1} parent=31 // pred_check
            %p371 = pneg %p367
          $region158: #{tpu_custom_call.1} parent=31 // pred_check_branch
            %373 = sbr.rel (%p371) target = $region160
          $region159: #{tpu_custom_call.1} parent=31 // pred_region
            %s374 = sshllo.u32 0, 1
            loop: start=0, step=1, limit=1
            $region161: #{tpu_custom_call.1} parent=159 // loop_pre_header
              _
            $region162: #{tpu_custom_call.1} parent=159 // loop_header
              %s376 = sphi 0, %s380
              %p377 = scmp.ge.s32.totalorder %s376, 1
              %s381 = sphi %s364, %s364
              %s382 = sphi %s365, %s365
            $region163: #{tpu_custom_call.1} parent=159 // loop_header_branch
              %379 = sbr.rel (%p377) target = $region167
            $region164: #{tpu_custom_call.1} parent=159 // loop_body
              %v383 = vld [vmem:[%s381] sm:%s374]
              %384 = vst [vmem:[%s382] sm:%s374] %v383
            $region165: #{tpu_custom_call.1} parent=159 // loop_footer
              %s380 = sadd.s32 1, %s376
            $region166: #{tpu_custom_call.1} parent=159 // loop_footer_branch
              %375 = sbr.rel target = $region162
            $region167: #{tpu_custom_call.1} parent=159 // loop_exit
              _
          $region160: #{tpu_custom_call.1} parent=31 // pred_fallthru
            _
          // Predicated region
          $region179: #{tpu_custom_call.1} parent=31 // pred_check
            _
          $region180: #{tpu_custom_call.1} parent=31 // pred_check_branch
            %408 = sbr.rel (0) target = $region182
          $region181: #{tpu_custom_call.1} parent=31 // pred_region
            %409 = vsyncadd [#allocation5], 16
          $region182: #{tpu_custom_call.1} parent=31 // pred_fallthru
            _
          %s410 = sshll.u32 %s213, 4
          %411 = dma.done [#allocation5], %s410
          %s412 = sld [smem:[#allocation7 + $0x5]]
          %s413 = scalar_lea.vmem %s1, %s412
          %s414 = scalar_lea.vmem [#allocation2], 5
          %p416 = scmp.lt.u32.totalorder 1, 8
          %p417 = pneg %p416
          // Predicated region
          $region183: #{tpu_custom_call.1} parent=31 // pred_check
            _
          $region184: #{tpu_custom_call.1} parent=31 // pred_check_branch
            %419 = sbr.rel (%p416) target = $region186
          $region185: #{tpu_custom_call.1} parent=31 // pred_region
            %s434 = sand.u32 1, 7
            %p435 = scmp.eq.s32.totalorder %s434, 0
            %p436 = pneg %p435
            // Predicated region
            $region198: #{tpu_custom_call.1} parent=185 // pred_check
              _
            $region199: #{tpu_custom_call.1} parent=185 // pred_check_branch
              %438 = sbr.rel (%p435) target = $region201
            $region200: #{tpu_custom_call.1} parent=185 // pred_region
              %s439 = sand.u32 1, 7
              %s440 = ssub.s32 1, %s439
              %s441 = scalar_lea.vmem %s413, %s440
              %s442 = ssub.s32 1, %s439
              %s443 = scalar_lea.vmem %s414, %s442 [#allocation2]
              %s444 = sshllo.u32 0, %s439
              loop: start=0, step=1, limit=1
              $region202: #{tpu_custom_call.1} parent=200 // loop_pre_header
                _
              $region203: #{tpu_custom_call.1} parent=200 // loop_header
                %s446 = sphi 0, %s450
                %p447 = scmp.ge.s32.totalorder %s446, 1
                %s451 = sphi %s441, %s441
                %s452 = sphi %s443, %s443
              $region204: #{tpu_custom_call.1} parent=200 // loop_header_branch
                %449 = sbr.rel (%p447) target = $region208
              $region205: #{tpu_custom_call.1} parent=200 // loop_body
                %v453 = vld [vmem:[%s451] sm:%s444]
                %454 = vst [vmem:[%s452] sm:%s444] %v453
              $region206: #{tpu_custom_call.1} parent=200 // loop_footer
                %s450 = sadd.s32 1, %s446
              $region207: #{tpu_custom_call.1} parent=200 // loop_footer_branch
                %445 = sbr.rel target = $region203
              $region208: #{tpu_custom_call.1} parent=200 // loop_exit
                _
            $region201: #{tpu_custom_call.1} parent=185 // pred_fallthru
              _
          $region186: #{tpu_custom_call.1} parent=31 // pred_fallthru
            _
          // Predicated region
          $region187: #{tpu_custom_call.1} parent=31 // pred_check
            %p420 = pneg %p416
          $region188: #{tpu_custom_call.1} parent=31 // pred_check_branch
            %422 = sbr.rel (%p420) target = $region190
          $region189: #{tpu_custom_call.1} parent=31 // pred_region
            %s423 = sshllo.u32 0, 1
            loop: start=0, step=1, limit=1
            $region191: #{tpu_custom_call.1} parent=189 // loop_pre_header
              _
            $region192: #{tpu_custom_call.1} parent=189 // loop_header
              %s425 = sphi 0, %s429
              %p426 = scmp.ge.s32.totalorder %s425, 1
              %s430 = sphi %s413, %s413
              %s431 = sphi %s414, %s414
            $region193: #{tpu_custom_call.1} parent=189 // loop_header_branch
              %428 = sbr.rel (%p426) target = $region197
            $region194: #{tpu_custom_call.1} parent=189 // loop_body
              %v432 = vld [vmem:[%s430] sm:%s423]
              %433 = vst [vmem:[%s431] sm:%s423] %v432
            $region195: #{tpu_custom_call.1} parent=189 // loop_footer
              %s429 = sadd.s32 1, %s425
            $region196: #{tpu_custom_call.1} parent=189 // loop_footer_branch
              %424 = sbr.rel target = $region192
            $region197: #{tpu_custom_call.1} parent=189 // loop_exit
              _
          $region190: #{tpu_custom_call.1} parent=31 // pred_fallthru
            _
          // Predicated region
          $region209: #{tpu_custom_call.1} parent=31 // pred_check
            _
          $region210: #{tpu_custom_call.1} parent=31 // pred_check_branch
            %457 = sbr.rel (0) target = $region212
          $region211: #{tpu_custom_call.1} parent=31 // pred_region
            %458 = vsyncadd [#allocation5], 16
          $region212: #{tpu_custom_call.1} parent=31 // pred_fallthru
            _
          %s459 = sshll.u32 %s213, 4
          %460 = dma.done [#allocation5], %s459
          %s461 = sld [smem:[#allocation7 + $0x6]]
          %s462 = scalar_lea.vmem %s1, %s461
          %s463 = scalar_lea.vmem [#allocation2], 6
          %p465 = scmp.lt.u32.totalorder 1, 8
          %p466 = pneg %p465
          // Predicated region
          $region213: #{tpu_custom_call.1} parent=31 // pred_check
            _
          $region214: #{tpu_custom_call.1} parent=31 // pred_check_branch
            %468 = sbr.rel (%p465) target = $region216
          $region215: #{tpu_custom_call.1} parent=31 // pred_region
            %s483 = sand.u32 1, 7
            %p484 = scmp.eq.s32.totalorder %s483, 0
            %p485 = pneg %p484
            // Predicated region
            $region228: #{tpu_custom_call.1} parent=215 // pred_check
              _
            $region229: #{tpu_custom_call.1} parent=215 // pred_check_branch
              %487 = sbr.rel (%p484) target = $region231
            $region230: #{tpu_custom_call.1} parent=215 // pred_region
              %s488 = sand.u32 1, 7
              %s489 = ssub.s32 1, %s488
              %s490 = scalar_lea.vmem %s462, %s489
              %s491 = ssub.s32 1, %s488
              %s492 = scalar_lea.vmem %s463, %s491 [#allocation2]
              %s493 = sshllo.u32 0, %s488
              loop: start=0, step=1, limit=1
              $region232: #{tpu_custom_call.1} parent=230 // loop_pre_header
                _
              $region233: #{tpu_custom_call.1} parent=230 // loop_header
                %s495 = sphi 0, %s499
                %p496 = scmp.ge.s32.totalorder %s495, 1
                %s500 = sphi %s490, %s490
                %s501 = sphi %s492, %s492
              $region234: #{tpu_custom_call.1} parent=230 // loop_header_branch
                %498 = sbr.rel (%p496) target = $region238
              $region235: #{tpu_custom_call.1} parent=230 // loop_body
                %v502 = vld [vmem:[%s500] sm:%s493]
                %503 = vst [vmem:[%s501] sm:%s493] %v502
              $region236: #{tpu_custom_call.1} parent=230 // loop_footer
                %s499 = sadd.s32 1, %s495
              $region237: #{tpu_custom_call.1} parent=230 // loop_footer_branch
                %494 = sbr.rel target = $region233
              $region238: #{tpu_custom_call.1} parent=230 // loop_exit
                _
            $region231: #{tpu_custom_call.1} parent=215 // pred_fallthru
              _
          $region216: #{tpu_custom_call.1} parent=31 // pred_fallthru
            _
          // Predicated region
          $region217: #{tpu_custom_call.1} parent=31 // pred_check
            %p469 = pneg %p465
          $region218: #{tpu_custom_call.1} parent=31 // pred_check_branch
            %471 = sbr.rel (%p469) target = $region220
          $region219: #{tpu_custom_call.1} parent=31 // pred_region
            %s472 = sshllo.u32 0, 1
            loop: start=0, step=1, limit=1
            $region221: #{tpu_custom_call.1} parent=219 // loop_pre_header
              _
            $region222: #{tpu_custom_call.1} parent=219 // loop_header
              %s474 = sphi 0, %s478
              %p475 = scmp.ge.s32.totalorder %s474, 1
              %s479 = sphi %s462, %s462
              %s480 = sphi %s463, %s463
            $region223: #{tpu_custom_call.1} parent=219 // loop_header_branch
              %477 = sbr.rel (%p475) target = $region227
            $region224: #{tpu_custom_call.1} parent=219 // loop_body
              %v481 = vld [vmem:[%s479] sm:%s472]
              %482 = vst [vmem:[%s480] sm:%s472] %v481
            $region225: #{tpu_custom_call.1} parent=219 // loop_footer
              %s478 = sadd.s32 1, %s474
            $region226: #{tpu_custom_call.1} parent=219 // loop_footer_branch
              %473 = sbr.rel target = $region222
            $region227: #{tpu_custom_call.1} parent=219 // loop_exit
              _
          $region220: #{tpu_custom_call.1} parent=31 // pred_fallthru
            _
          // Predicated region
          $region239: #{tpu_custom_call.1} parent=31 // pred_check
            _
          $region240: #{tpu_custom_call.1} parent=31 // pred_check_branch
            %506 = sbr.rel (0) target = $region242
          $region241: #{tpu_custom_call.1} parent=31 // pred_region
            %507 = vsyncadd [#allocation5], 16
          $region242: #{tpu_custom_call.1} parent=31 // pred_fallthru
            _
          %s508 = sshll.u32 %s213, 4
          %509 = dma.done [#allocation5], %s508
          %s510 = sld [smem:[#allocation7 + $0x7]]
          %s511 = scalar_lea.vmem %s1, %s510
          %s512 = scalar_lea.vmem [#allocation2], 7
          %p514 = scmp.lt.u32.totalorder 1, 8
          %p515 = pneg %p514
          // Predicated region
          $region243: #{tpu_custom_call.1} parent=31 // pred_check
            _
          $region244: #{tpu_custom_call.1} parent=31 // pred_check_branch
            %517 = sbr.rel (%p514) target = $region246
          $region245: #{tpu_custom_call.1} parent=31 // pred_region
            %s532 = sand.u32 1, 7
            %p533 = scmp.eq.s32.totalorder %s532, 0
            %p534 = pneg %p533
            // Predicated region
            $region258: #{tpu_custom_call.1} parent=245 // pred_check
              _
            $region259: #{tpu_custom_call.1} parent=245 // pred_check_branch
              %536 = sbr.rel (%p533) target = $region261
            $region260: #{tpu_custom_call.1} parent=245 // pred_region
              %s537 = sand.u32 1, 7
              %s538 = ssub.s32 1, %s537
              %s539 = scalar_lea.vmem %s511, %s538
              %s540 = ssub.s32 1, %s537
              %s541 = scalar_lea.vmem %s512, %s540 [#allocation2]
              %s542 = sshllo.u32 0, %s537
              loop: start=0, step=1, limit=1
              $region262: #{tpu_custom_call.1} parent=260 // loop_pre_header
                _
              $region263: #{tpu_custom_call.1} parent=260 // loop_header
                %s544 = sphi 0, %s548
                %p545 = scmp.ge.s32.totalorder %s544, 1
                %s549 = sphi %s539, %s539
                %s550 = sphi %s541, %s541
              $region264: #{tpu_custom_call.1} parent=260 // loop_header_branch
                %547 = sbr.rel (%p545) target = $region268
              $region265: #{tpu_custom_call.1} parent=260 // loop_body
                %v551 = vld [vmem:[%s549] sm:%s542]
                %552 = vst [vmem:[%s550] sm:%s542] %v551
              $region266: #{tpu_custom_call.1} parent=260 // loop_footer
                %s548 = sadd.s32 1, %s544
              $region267: #{tpu_custom_call.1} parent=260 // loop_footer_branch
                %543 = sbr.rel target = $region263
              $region268: #{tpu_custom_call.1} parent=260 // loop_exit
                _
            $region261: #{tpu_custom_call.1} parent=245 // pred_fallthru
              _
          $region246: #{tpu_custom_call.1} parent=31 // pred_fallthru
            _
          // Predicated region
          $region247: #{tpu_custom_call.1} parent=31 // pred_check
            %p518 = pneg %p514
          $region248: #{tpu_custom_call.1} parent=31 // pred_check_branch
            %520 = sbr.rel (%p518) target = $region250
          $region249: #{tpu_custom_call.1} parent=31 // pred_region
            %s521 = sshllo.u32 0, 1
            loop: start=0, step=1, limit=1
            $region251: #{tpu_custom_call.1} parent=249 // loop_pre_header
              _
            $region252: #{tpu_custom_call.1} parent=249 // loop_header
              %s523 = sphi 0, %s527
              %p524 = scmp.ge.s32.totalorder %s523, 1
              %s528 = sphi %s511, %s511
              %s529 = sphi %s512, %s512
            $region253: #{tpu_custom_call.1} parent=249 // loop_header_branch
              %526 = sbr.rel (%p524) target = $region257
            $region254: #{tpu_custom_call.1} parent=249 // loop_body
              %v530 = vld [vmem:[%s528] sm:%s521]
              %531 = vst [vmem:[%s529] sm:%s521] %v530
            $region255: #{tpu_custom_call.1} parent=249 // loop_footer
              %s527 = sadd.s32 1, %s523
            $region256: #{tpu_custom_call.1} parent=249 // loop_footer_branch
              %522 = sbr.rel target = $region252
            $region257: #{tpu_custom_call.1} parent=249 // loop_exit
              _
          $region250: #{tpu_custom_call.1} parent=31 // pred_fallthru
            _
          // Predicated region
          $region269: #{tpu_custom_call.1} parent=31 // pred_check
            _
          $region270: #{tpu_custom_call.1} parent=31 // pred_check_branch
            %555 = sbr.rel (0) target = $region272
          $region271: #{tpu_custom_call.1} parent=31 // pred_region
            %556 = vsyncadd [#allocation5], 16
          $region272: #{tpu_custom_call.1} parent=31 // pred_fallthru
            _
          %s557 = sshll.u32 %s213, 4
          %558 = dma.done [#allocation5], %s557
        $region32: #{tpu_custom_call.1} parent=27 // pred_fallthru
          _
        %v559 = vld [vmem:[#allocation2] sm:$0xff]
        %v560 = vpack.c.bf16 %v559, %v559
        %v561 = vld [vmem:[%s152] sm:$0xf]
        %v562 = vld [vmem:[%s152 + $0x4] sm:$0xf]
        %v563 = vld [vmem:[%s152 + $0x8] sm:$0xf]
        %v564 = vld [vmem:[%s152 + $0xc] sm:$0xf]
        %v565 = vld [vmem:[%s152 + $0x10] sm:$0xf]
        %v566 = vld [vmem:[%s152 + $0x14] sm:$0xf]
        %v567 = vld [vmem:[%s152 + $0x18] sm:$0xf]
        %v568 = vld [vmem:[%s152 + $0x1c] sm:$0xf]
        %v569 = vld [vmem:[%s152 + $0x20] sm:$0xf]
        %v570 = vld [vmem:[%s152 + $0x24] sm:$0xf]
        %v571 = vld [vmem:[%s152 + $0x28] sm:$0xf]
        %v572 = vld [vmem:[%s152 + $0x2c] sm:$0xf]
        %v573 = vld [vmem:[%s152 + $0x30] sm:$0xf]
        %v574 = vld [vmem:[%s152 + $0x34] sm:$0xf]
        %v575 = vld [vmem:[%s152 + $0x38] sm:$0xf]
        %v576 = vld [vmem:[%s152 + $0x3c] sm:$0xf]
        %v577 = vld [vmem:[%s152 + $0x40] sm:$0xf]
        %v578 = vld [vmem:[%s152 + $0x44] sm:$0xf]
        %v579 = vld [vmem:[%s152 + $0x48] sm:$0xf]
        %v580 = vld [vmem:[%s152 + $0x4c] sm:$0xf]
        %v581 = vld [vmem:[%s152 + $0x50] sm:$0xf]
        %v582 = vld [vmem:[%s152 + $0x54] sm:$0xf]
        %v583 = vld [vmem:[%s152 + $0x58] sm:$0xf]
        %v584 = vld [vmem:[%s152 + $0x5c] sm:$0xf]
        %v585 = vld [vmem:[%s152 + $0x60] sm:$0xf]
        %v586 = vld [vmem:[%s152 + $0x64] sm:$0xf]
        %v587 = vld [vmem:[%s152 + $0x68] sm:$0xf]
        %v588 = vld [vmem:[%s152 + $0x6c] sm:$0xf]
        %v589 = vld [vmem:[%s152 + $0x70] sm:$0xf]
        %v590 = vld [vmem:[%s152 + $0x74] sm:$0xf]
        %v591 = vld [vmem:[%s152 + $0x78] sm:$0xf]
        %v592 = vld [vmem:[%s152 + $0x7c] sm:$0xf]
        %v593 = vld [vmem:[%s157] sm:$0x3]
        %v595 = vlaneseq
        %v596 = vshrl.u32 %v595, 7
        %v597 = vsub.s32 0, %v596
        %v598 = vrot.slane %v593, %v597
        %v599 = vlaneseq
        %v600 = vshrl.u32 %v599, 7
        %v601 = vsub.s32 1, %v600
        %v602 = vrot.slane %v593, %v601
        %v637 = vunpack.c.l.b16 %v561
        %v638 = vunpack.c.l.b16 %v562
        %v639 = vunpack.c.l.b16 %v563
        %v640 = vunpack.c.l.b16 %v564
        %v641 = vunpack.c.l.b16 %v565
        %v642 = vunpack.c.l.b16 %v566
        %v643 = vunpack.c.l.b16 %v567
        %v644 = vunpack.c.l.b16 %v568
        %v645 = vunpack.c.l.b16 %v569
        %v646 = vunpack.c.l.b16 %v570
        %v647 = vunpack.c.l.b16 %v571
        %v648 = vunpack.c.l.b16 %v572
        %v649 = vunpack.c.l.b16 %v573
        %v650 = vunpack.c.l.b16 %v574
        %v651 = vunpack.c.l.b16 %v575
        %v652 = vunpack.c.l.b16 %v576
        %v653 = vunpack.c.l.b16 %v577
        %v654 = vunpack.c.l.b16 %v578
        %v655 = vunpack.c.l.b16 %v579
        %v656 = vunpack.c.l.b16 %v580
        %v657 = vunpack.c.l.b16 %v581
        %v658 = vunpack.c.l.b16 %v582
        %v659 = vunpack.c.l.b16 %v583
        %v660 = vunpack.c.l.b16 %v584
        %v661 = vunpack.c.l.b16 %v585
        %v662 = vunpack.c.l.b16 %v586
        %v663 = vunpack.c.l.b16 %v587
        %v664 = vunpack.c.l.b16 %v588
        %v665 = vunpack.c.l.b16 %v589
        %v666 = vunpack.c.l.b16 %v590
        %v667 = vunpack.c.l.b16 %v591
        %v668 = vunpack.c.l.b16 %v592
        %v669 = vpack.c.b16 %v638, %v637
        %v670 = vpack.c.b16 %v640, %v639
        %v671 = vpack.c.b16 %v642, %v641
        %v672 = vpack.c.b16 %v644, %v643
        %v673 = vpack.c.b16 %v646, %v645
        %v674 = vpack.c.b16 %v648, %v647
        %v675 = vpack.c.b16 %v650, %v649
        %v676 = vpack.c.b16 %v652, %v651
        %v677 = vpack.c.b16 %v654, %v653
        %v678 = vpack.c.b16 %v656, %v655
        %v679 = vpack.c.b16 %v658, %v657
        %v680 = vpack.c.b16 %v660, %v659
        %v681 = vpack.c.b16 %v662, %v661
        %v682 = vpack.c.b16 %v664, %v663
        %v683 = vpack.c.b16 %v666, %v665
        %v684 = vpack.c.b16 %v668, %v667
        %vm685 = vcmask 523264
        %v687 = vsel %vm685, %v560, 0
        %v690 = vsel %vm685, %v669, 0
        %v693 = vsel %vm685, %v670, 0
        %v696 = vsel %vm685, %v671, 0
        %v699 = vsel %vm685, %v672, 0
        %v702 = vsel %vm685, %v673, 0
        %v705 = vsel %vm685, %v674, 0
        %v708 = vsel %vm685, %v675, 0
        %v711 = vsel %vm685, %v676, 0
        %v714 = vsel %vm685, %v677, 0
        %v717 = vsel %vm685, %v678, 0
        %v720 = vsel %vm685, %v679, 0
        %v723 = vsel %vm685, %v680, 0
        %v726 = vsel %vm685, %v681, 0
        %v729 = vsel %vm685, %v682, 0
        %v732 = vsel %vm685, %v683, 0
        %v735 = vsel %vm685, %v684, 0
        %737 = vmatprep.subr.bf16.mxu0 0
        %738 = vmatpush1.bf16.xpose.msra.mxu0 %v690
        %739 = vmatprep.subr.bf16.mxu0 0
        %740 = vmatpush1.bf16.xpose.msra.mxu0 %v693
        %741 = vmatprep.subr.bf16.mxu0 0
        %742 = vmatpush1.bf16.xpose.msra.mxu0 %v696
        %743 = vmatprep.subr.bf16.mxu0 0
        %744 = vmatpush1.bf16.xpose.msra.mxu0 %v699
        %745 = vmatprep.subr.bf16.mxu0 0
        %746 = vmatpush1.bf16.xpose.msra.mxu0 %v702
        %747 = vmatprep.subr.bf16.mxu0 0
        %748 = vmatpush1.bf16.xpose.msra.mxu0 %v705
        %749 = vmatprep.subr.bf16.mxu0 0
        %750 = vmatpush1.bf16.xpose.msra.mxu0 %v708
        %751 = vmatprep.subr.bf16.mxu0 0
        %752 = vmatpush1.bf16.xpose.msra.mxu0 %v711
        %753 = vmatprep.subr.bf16.mxu0 0
        %754 = vmatpush1.bf16.xpose.msra.mxu0 %v714
        %755 = vmatprep.subr.bf16.mxu0 0
        %756 = vmatpush1.bf16.xpose.msra.mxu0 %v717
        %757 = vmatprep.subr.bf16.mxu0 0
        %758 = vmatpush1.bf16.xpose.msra.mxu0 %v720
        %759 = vmatprep.subr.bf16.mxu0 0
        %760 = vmatpush1.bf16.xpose.msra.mxu0 %v723
        %761 = vmatprep.subr.bf16.mxu0 0
        %762 = vmatpush1.bf16.xpose.msra.mxu0 %v726
        %763 = vmatprep.subr.bf16.mxu0 0
        %764 = vmatpush1.bf16.xpose.msra.mxu0 %v729
        %765 = vmatprep.subr.bf16.mxu0 0
        %766 = vmatpush1.bf16.xpose.msra.mxu0 %v732
        %767 = vmatprep.subr.bf16.mxu0 0
        %768 = vmatpush1.bf16.xpose.msra.mxu0 %v735
        %769 = vmatprep.mubr.bf16.mxu0 0
        %770 = vmatmul.mubr.bf16.gmra.mrb[0].mxu0 %v687
        %v771 = vpop.f32.mrb[0].mxu0
        %v772 = vadd.f32 %v598, %v771
        %v773 = vpop.f32.mrb[0].mxu0
        %v774 = vadd.f32 %v602, %v773
        %v775 = vpop.f32.mrb[0].mxu0
        %v776 = vpop.f32.mrb[0].mxu0
        %777 = vdwg.mxu0
        %s778 = smul.u32 %s22, 2
        %s779 = smul.addr %s778, 8
        %s780 = scalar_lea.vmem [#allocation8], %s779
        %781 = vst [vmem:[%s780] sm:$0xff] %v772
        %782 = vst [vmem:[%s780 + $0x8] sm:$0xff] %v774
        %v783 = vld [vmem:[#allocation3] sm:$0xff]
        %v784 = vmax.f32 %v772, %v774
        %785 = vmax.xlane.f32.xlu0 %v784
        %v786 = vpop.xlane.xlu0 %785
        %v787 = vmax.f32 %v783, %v786
        %v788 = vld [vmem:[#allocation4] sm:$0xff]
        %v789 = vsub.f32 %v783, %v787
        %v790 = vmul.f32 %v789, 1.442695
        %v791 = vpow.pop %v790
        %v792 = vmul.f32 %v788, %v791
        %794 = vset.pattern.permute.xlu0 0
        %795 = vperm.xlu0 %794, %v787
        %v796 = vpop.permute.xlu0 %795
        %v798 = vsub.f32 %v772, %v796
        %v799 = vsub.f32 %v774, %v796
        %v800 = vmul.f32 %v798, 1.442695
        %v801 = vpow.pop %v800
        %v802 = vmul.f32 %v799, 1.442695
        %v803 = vpow.pop %v802
        %v804 = vadd.f32 %v801, %v803
        %805 = vadd.xlane.f32.xlu0 %v804
        %v806 = vpop.xlane.xlu0 %805
        %v807 = vadd.f32 %v792, %v806
        %vm808 = vcmask 7168
        %809 = vst.msk [vmem:[#allocation4] sm:$0xff] %vm808, %v807
        %810 = vst.msk [vmem:[#allocation3] sm:$0xff] %vm808, %v787
        %p811 = scmp.eq.s32.totalorder %s22, 3
        // Predicated region
        $region273: #{tpu_custom_call.1} parent=27 // pred_check
          %p812 = pneg %p811
        $region274: #{tpu_custom_call.1} parent=27 // pred_check_branch
          %814 = sbr.rel (%p812) target = $region276
        $region275: #{tpu_custom_call.1} parent=27 // pred_region
          %v815 = vld [vmem:[#allocation3] sm:$0xff]
          %v816 = vld [vmem:[#allocation4] sm:$0xff]
          %v817 = vrcp.pop %v816
          %v818 = vld [vmem:[#allocation8] sm:$0xff]
          %v819 = vld [vmem:[#allocation8 + $0x8] sm:$0xff]
          %v820 = vld [vmem:[#allocation8 + $0x10] sm:$0xff]
          %v821 = vld [vmem:[#allocation8 + $0x18] sm:$0xff]
          %v822 = vld [vmem:[#allocation8 + $0x20] sm:$0xff]
          %v823 = vld [vmem:[#allocation8 + $0x28] sm:$0xff]
          %v824 = vld [vmem:[#allocation8 + $0x30] sm:$0xff]
          %v825 = vld [vmem:[#allocation8 + $0x38] sm:$0xff]
          %827 = vset.pattern.permute.xlu0 0
          %828 = vperm.xlu0 %827, %v815
          %v829 = vpop.permute.xlu0 %828
          %v831 = vsub.f32 %v818, %v829
          %v832 = vsub.f32 %v819, %v829
          %v833 = vsub.f32 %v820, %v829
          %v834 = vsub.f32 %v821, %v829
          %v835 = vsub.f32 %v822, %v829
          %v836 = vsub.f32 %v823, %v829
          %v837 = vsub.f32 %v824, %v829
          %v838 = vsub.f32 %v825, %v829
          %v839 = vmul.f32 %v831, 1.442695
          %v840 = vpow.pop %v839
          %v841 = vmul.f32 %v832, 1.442695
          %v842 = vpow.pop %v841
          %v843 = vmul.f32 %v833, 1.442695
          %v844 = vpow.pop %v843
          %v845 = vmul.f32 %v834, 1.442695
          %v846 = vpow.pop %v845
          %v847 = vmul.f32 %v835, 1.442695
          %v848 = vpow.pop %v847
          %v849 = vmul.f32 %v836, 1.442695
          %v850 = vpow.pop %v849
          %v851 = vmul.f32 %v837, 1.442695
          %v852 = vpow.pop %v851
          %v853 = vmul.f32 %v838, 1.442695
          %v854 = vpow.pop %v853
          %856 = vset.pattern.permute.xlu0 0
          %857 = vperm.xlu0 %856, %v817
          %v858 = vpop.permute.xlu0 %857
          %v860 = vmul.f32 %v840, %v858
          %v861 = vmul.f32 %v842, %v858
          %v862 = vmul.f32 %v844, %v858
          %v863 = vmul.f32 %v846, %v858
          %v864 = vmul.f32 %v848, %v858
          %v865 = vmul.f32 %v850, %v858
          %v866 = vmul.f32 %v852, %v858
          %v867 = vmul.f32 %v854, %v858
          %868 = vst [vmem:[#allocation8] sm:$0xff] %v860
          %869 = vst [vmem:[#allocation8 + $0x8] sm:$0xff] %v861
          %870 = vst [vmem:[#allocation8 + $0x10] sm:$0xff] %v862
          %871 = vst [vmem:[#allocation8 + $0x18] sm:$0xff] %v863
          %872 = vst [vmem:[#allocation8 + $0x20] sm:$0xff] %v864
          %873 = vst [vmem:[#allocation8 + $0x28] sm:$0xff] %v865
          %874 = vst [vmem:[#allocation8 + $0x30] sm:$0xff] %v866
          %875 = vst [vmem:[#allocation8 + $0x38] sm:$0xff] %v867
        $region276: #{tpu_custom_call.1} parent=27 // pred_fallthru
          _
        // Predicated region
        $region277: #{tpu_custom_call.1} parent=27 // pred_check
          %p876 = pneg %p87
        $region278: #{tpu_custom_call.1} parent=27 // pred_check_branch
          %878 = sbr.rel (%p876) target = $region280
        $region279: #{tpu_custom_call.1} parent=27 // pred_region
          %s880 = ssub.s32 1024, 1024
          %881 = vsyncadd [#allocation9], %s880
          %s882 = sshll.u32 [#allocation8], 4
          %s883 = int_to_ptr.vmem [resolvable:$true] %s882
          %888 = dma.vmem_to_hbm [thread:$0]  %s883, 1024, %s4, [#allocation9], 256, 256, 16
        $region280: #{tpu_custom_call.1} parent=27 // pred_fallthru
          _
        // Predicated region
        $region281: #{tpu_custom_call.1} parent=27 // pred_check
          %p889 = pneg %p87
        $region282: #{tpu_custom_call.1} parent=27 // pred_check_branch
          %891 = sbr.rel (%p889) target = $region284
        $region283: #{tpu_custom_call.1} parent=27 // pred_region
          %892 = dma.done [#allocation9], 1024
        $region284: #{tpu_custom_call.1} parent=27 // pred_fallthru
          _
      $region28: #{tpu_custom_call.1} parent=5 // pred_fallthru
        _
      %p893 = scmp.le.s32.totalorder 2, %s17
      // Predicated region
      $region285: #{tpu_custom_call.1} parent=5 // pred_check
        %p894 = pneg %p893
      $region286: #{tpu_custom_call.1} parent=5 // pred_check_branch
        %896 = sbr.rel (%p894) target = $region288
      $region287: #{tpu_custom_call.1} parent=5 // pred_region
        %s897 = ssub.s32 %s17, 2
      $region288: #{tpu_custom_call.1} parent=5 // pred_fallthru
        _
    $region6: #{tpu_custom_call.1} parent=1 // loop_footer
      %s21 = sadd.s32 1, %s17
    $region7: #{tpu_custom_call.1} parent=1 // loop_footer_branch
      %16 = sbr.rel target = $region3
    $region8: #{tpu_custom_call.1} parent=1 // loop_exit
      _
    %898 = vsyncpa [#allocation9], 1
    %s899 = scalar_lea.sflag [#allocation9], 1
    %900 = vsyncpa %s899, 1
  %901 = vsyncmov [#allocation5]
  %s902 = vpop.sfrf %901
  %p903 = scmp.eq.s32.totalorder %s902, 0
  %p904 = pneg %p903
  %906 = shalt.err (%p904)

</llo_original>
